<compile_context>
chip_gen: v7x
topology: tpu7x:2x2x1
jax: 0.10.0
libtpu: 0.0.40
codegen_flags: <defaults>
</compile_context>

<pallas_src>
import jax
import jax.numpy as jnp
from jax.experimental import pallas as pl
from jax.experimental.pallas import tpu as pltpu


def _round_up(x: int, m: int) -> int:
    return ((x + m - 1) // m) * m


def _physical_vmem_bytes() -> int:
    try:
        return int(pltpu.get_tpu_info().vmem_capacity_bytes)
    except Exception:
        kind = jax.devices()[0].device_kind.lower()
        return (64 << 20) if "v7" in kind else (128 << 20)


def _is_v7() -> bool:
    try:
        return "v7" in jax.devices()[0].device_kind.lower()
    except Exception:
        return False


def _butd_kernel(obj_ref, sp_ref, woc_ref, wsc_ref, b_ref, out_ref):
    # Fused single-sweep epilogue:
    #   * main contraction on the MXU: (TILE_M, F) @ (F, Hp), f32 accumulation
    #   * K=4 spatial contraction on the VPU as 4 broadcast-FMAs (never feed a K=4
    #     operand to the MXU)
    #   * pre-folded bias
    # all combined in one expression -> one accumulator pass, one (unmasked,
    # lane-dense) store.
    sp = sp_ref[...].astype(jnp.float32)          # (TILE_M, 4)
    wsc = wsc_ref[...].astype(jnp.float32)        # (4, Hp)
    acc = (
        jnp.dot(obj_ref[...], woc_ref[...], preferred_element_type=jnp.float32)
        + sp[:, 0:1] * wsc[0:1, :]
        + sp[:, 1:2] * wsc[1:2, :]
        + sp[:, 2:3] * wsc[2:3, :]
        + sp[:, 3:4] * wsc[3:4, :]
        + b_ref[...].astype(jnp.float32)
    )
    out_ref[...] = acc.astype(out_ref.dtype)


def fold_params(params):
    """One-time fold of the three Linear layers into a single affine map.

    Call this at parameter-load time (NOT inside the per-step forward path):
    the (F,H)@(H,H) folds cost ~2*F*H^2 FLOPs and should run exactly once.
    Also pads the output/lane dimension H up to a multiple of 128 here so the
    per-call path does no weight work at all.
    """
    H = params["wo"].shape[0]                         # nn.Linear weight is (out, in)
    wo_t = params["wo"].T.astype(jnp.float32)         # (F, H)
    ws_t = params["ws"].T.astype(jnp.float32)         # (4, H)
    wc_t = params["wc"].T.astype(jnp.float32)         # (2H, H)
    wc1, wc2 = wc_t[:H, :], wc_t[H:, :]               # (H, H) each

    w_oc = wo_t @ wc1                                 # (F, H)
    w_sc = ws_t @ wc2                                 # (4, H)
    b = (params["bc"].astype(jnp.float32)
         + params["bo"].astype(jnp.float32) @ wc1
         + params["bs"].astype(jnp.float32) @ wc2)    # (H,)

    Hp = _round_up(H, 128)                            # lane-dense output stores
    if Hp != H:
        w_oc = jnp.pad(w_oc, ((0, 0), (0, Hp - H)))
        w_sc = jnp.pad(w_sc, ((0, 0), (0, Hp - H)))
        b = jnp.pad(b, (0, Hp - H))

    return {"w_oc": w_oc, "w_sc": w_sc, "b": b.reshape(1, Hp), "hidden_dim": H}


def bottom_up_attention_folded(object_features, spatial_features, folded):
    """
    object_features : (B, N, F)
    spatial_features: (B, N, 4)
    folded          : output of fold_params()
    returns         : (B, N, H)
    """
    B, N, F = object_features.shape
    H = folded["hidden_dim"]
    Hp = folded["w_oc"].shape[1]
    M = B * N

    obj2d = object_features.reshape(M, F)
    sp2d = spatial_features.reshape(M, 4)

    # ---- tile size & VMEM budget (generation-aware) ------------------------
    bpe = 4
    vmem_cap = int(_physical_vmem_bytes() * 0.75)     # ~96 MiB v5e/v6e, ~48 MiB v7x
    base_tile = 512 if _is_v7() else 1024
    # >= 2 grid steps when possible so both v7x TensorCores get work; multiple of 8.
    tile_m = min(base_tile, _round_up(max(pl.cdiv(M, 2), 1), 8))

    wgt_bytes = (F * Hp + 4 * Hp + Hp) * bpe          # resident, single-buffered
    while tile_m > 8:
        act_bytes = 2 * tile_m * (F + 4 + Hp) * bpe   # double-buffered act/out tiles
        if wgt_bytes + act_bytes <= vmem_cap:
            break
        tile_m = _round_up(tile_m // 2, 8)
    act_bytes = 2 * tile_m * (F + 4 + Hp) * bpe
    vmem_limit = max(16 << 20,
                     min(int((wgt_bytes + act_bytes) * 1.25) + (2 << 20), vmem_cap))

    grid_m = pl.cdiv(M, tile_m)   # ragged last tile handled by Pallas (masked store)

    cost = pl.CostEstimate(
        flops=2 * M * (F + 4) * Hp,
        transcendentals=0,
        bytes_accessed=M * (F + 4 + Hp) * bpe + (F + 4 + 1) * Hp * bpe,
    )

    def _build(single_buffer_weights: bool):
        resident = ({"pipeline_mode": pl.Buffered(1)}
                    if single_buffer_weights else {})
        return pl.pallas_call(
            _butd_kernel,
            out_shape=jax.ShapeDtypeStruct((M, Hp), object_features.dtype),
            grid_spec=pltpu.PrefetchScalarGridSpec(
                num_scalar_prefetch=0,
                grid=(grid_m,),
                in_specs=[
                    pl.BlockSpec((tile_m, F), lambda i: (i, 0)),   # object rows (pipelined)
                    pl.BlockSpec((tile_m, 4), lambda i: (i, 0)),   # spatial rows (pipelined)
                    pl.BlockSpec((F, Hp), lambda i: (0, 0), **resident),  # folded W (resident)
                    pl.BlockSpec((4, Hp), lambda i: (0, 0), **resident),  # folded Ws (resident)
                    pl.BlockSpec((1, Hp), lambda i: (0, 0), **resident),  # folded bias (resident)
                ],
                out_specs=pl.BlockSpec((tile_m, Hp), lambda i: (i, 0)),
            ),
            compiler_params=pltpu.CompilerParams(
                dimension_semantics=("parallel",),     # shard row tiles across v7x's 2 TCs
                vmem_limit_bytes=vmem_limit,
            ),
            cost_estimate=cost,
        )

    args = (obj2d, sp2d, folded["w_oc"], folded["w_sc"], folded["b"])
    try:
        out2d = _build(True)(*args)
    except Exception:
        # Fallback for JAX versions that reject Buffered(1) on resident operands;
        # only costs one extra (double) weight buffer in VMEM.
        out2d = _build(False)(*args)

    if Hp != H:
        out2d = out2d[:, :H]
    return out2d.reshape(B, N, H)


def bottom_up_attention(object_features, spatial_features, params):
    """Convenience wrapper matching the module signature (folds on every call).
    Prefer fold_params() once + bottom_up_attention_folded() in a real pipeline."""
    return bottom_up_attention_folded(object_features, spatial_features,
                                      fold_params(params))


def init_params(key, feature_dim, hidden_dim):
    ks = jax.random.split(key, 6)

    def u(k, shape, fan_in):
        bound = 1.0 / jnp.sqrt(fan_in)
        return jax.random.uniform(k, shape, jnp.float32, -bound, bound)

    return {
        "wo": u(ks[0], (hidden_dim, feature_dim), feature_dim),
        "bo": u(ks[1], (hidden_dim,), feature_dim),
        "ws": u(ks[2], (hidden_dim, 4), 4),
        "bs": u(ks[3], (hidden_dim,), 4),
        "wc": u(ks[4], (hidden_dim, 2 * hidden_dim), 2 * hidden_dim),
        "bc": u(ks[5], (hidden_dim,), 2 * hidden_dim),
    }


def reference(object_features, spatial_features, params):
    po = jnp.einsum("bnf,hf->bnh", object_features, params["wo"]) + params["bo"]
    ps = jnp.einsum("bns,hs->bnh", spatial_features, params["ws"]) + params["bs"]
    comb = jnp.concatenate([po, ps], axis=-1)
    return jnp.einsum("bnc,hc->bnh", comb, params["wc"]) + params["bc"]


if __name__ == "__main__":
    batch, num_objects, feature_dim, hidden_dim = 2, 8, 32, 32
    key = jax.random.PRNGKey(0)
    k_obj, k_sp, k_params = jax.random.split(key, 3)

    object_features = jax.random.normal(
        k_obj, (batch, num_objects, feature_dim), jnp.float32)
    spatial_features = jax.random.uniform(
        k_sp, (batch, num_objects, 4), jnp.float32)
    params = init_params(k_params, feature_dim, hidden_dim)

    # Fold once (parameter-load time), then run the kernel.
    folded = fold_params(params)
    out = bottom_up_attention_folded(object_features, spatial_features, folded)
    out = jax.block_until_ready(out)

    ref = reference(object_features, spatial_features, params)
    assert out.shape == (batch, num_objects, hidden_dim)
    # Weight folding reorders f32 summation vs. the reference (exact linear-map
    # composition, not bit-identical) — allow a slightly looser tolerance.
    assert jnp.allclose(out, ref, atol=1e-4, rtol=1e-4), float(
        jnp.max(jnp.abs(out - ref)))
    print("KERNEL_OK")
</pallas_src>

<mosaic_0001>
module attributes {stable_mosaic.version = 11 : i64} {
  func.func @_butd_kernel(%arg0: i32, %arg1: memref<8x32xf32, #tpu.memory_space<vmem>>, %arg2: memref<8x4xf32, #tpu.memory_space<vmem>>, %arg3: memref<32x128xf32, #tpu.memory_space<vmem>>, %arg4: memref<4x128xf32, #tpu.memory_space<vmem>>, %arg5: memref<1x128xf32, #tpu.memory_space<vmem>>, %arg6: memref<8x128xf32, #tpu.memory_space<vmem>>) attributes {dimension_semantics = [#tpu.dimension_semantics<parallel>], iteration_bounds = array<i64: 2>, scalar_prefetch = 0 : i64, scratch_operands = 0 : i64, tpu.core_type = #tpu.core_type<tc>, window_params = [{transform_indices = @transform_0, window_bounds = array<i64: 8, 32>}, {transform_indices = @transform_1, window_bounds = array<i64: 8, 4>}, {pipeline_mode = #tpu.pipeline_mode<synchronous>, transform_indices = @transform_2, window_bounds = array<i64: 32, 128>}, {pipeline_mode = #tpu.pipeline_mode<synchronous>, transform_indices = @transform_3, window_bounds = array<i64: 4, 128>}, {pipeline_mode = #tpu.pipeline_mode<synchronous>, transform_indices = @transform_4, window_bounds = array<i64: 1, 128>}, {transform_indices = @transform_5, window_bounds = array<i64: 8, 128>}]} {
    %c0 = arith.constant 0 : index
    %c0_0 = arith.constant 0 : index
    %0 = vector.load %arg2[%c0, %c0_0] : memref<8x4xf32, #tpu.memory_space<vmem>>, vector<8x4xf32>
    %c0_1 = arith.constant 0 : index
    %c0_2 = arith.constant 0 : index
    %1 = vector.load %arg4[%c0_1, %c0_2] : memref<4x128xf32, #tpu.memory_space<vmem>>, vector<4x128xf32>
    %c0_3 = arith.constant 0 : index
    %c0_4 = arith.constant 0 : index
    %2 = vector.load %arg1[%c0_3, %c0_4] : memref<8x32xf32, #tpu.memory_space<vmem>>, vector<8x32xf32>
    %c0_5 = arith.constant 0 : index
    %c0_6 = arith.constant 0 : index
    %3 = vector.load %arg3[%c0_5, %c0_6] : memref<32x128xf32, #tpu.memory_space<vmem>>, vector<32x128xf32>
    %cst = arith.constant dense<0.000000e+00> : vector<8x128xf32>
    %4 = tpu.matmul %2, %3, %cst {dimension_numbers = #tpu.dot_dimension_numbers<[1], [0], [0], [1], [0, 0, 1, 1], [], []>} : vector<8x32xf32>, vector<32x128xf32>, vector<8x128xf32> -> vector<8x128xf32>
    %5 = vector.extract_strided_slice %0 {offsets = [0, 0], sizes = [8, 1], strides = [1, 1]} : vector<8x4xf32> to vector<8x1xf32>
    %6 = vector.extract_strided_slice %1 {offsets = [0, 0], sizes = [1, 128], strides = [1, 1]} : vector<4x128xf32> to vector<1x128xf32>
    %7 = vector.broadcast %5 : vector<8x1xf32> to vector<8x128xf32>
    %8 = vector.broadcast %6 : vector<1x128xf32> to vector<8x128xf32>
    %9 = arith.mulf %7, %8 : vector<8x128xf32>
    %10 = arith.addf %4, %9 : vector<8x128xf32>
    %11 = vector.extract_strided_slice %0 {offsets = [0, 1], sizes = [8, 1], strides = [1, 1]} : vector<8x4xf32> to vector<8x1xf32>
    %12 = vector.extract_strided_slice %1 {offsets = [1, 0], sizes = [1, 128], strides = [1, 1]} : vector<4x128xf32> to vector<1x128xf32>
    %13 = vector.broadcast %11 : vector<8x1xf32> to vector<8x128xf32>
    %14 = vector.broadcast %12 : vector<1x128xf32> to vector<8x128xf32>
    %15 = arith.mulf %13, %14 : vector<8x128xf32>
    %16 = arith.addf %10, %15 : vector<8x128xf32>
    %17 = vector.extract_strided_slice %0 {offsets = [0, 2], sizes = [8, 1], strides = [1, 1]} : vector<8x4xf32> to vector<8x1xf32>
    %18 = vector.extract_strided_slice %1 {offsets = [2, 0], sizes = [1, 128], strides = [1, 1]} : vector<4x128xf32> to vector<1x128xf32>
    %19 = vector.broadcast %17 : vector<8x1xf32> to vector<8x128xf32>
    %20 = vector.broadcast %18 : vector<1x128xf32> to vector<8x128xf32>
    %21 = arith.mulf %19, %20 : vector<8x128xf32>
    %22 = arith.addf %16, %21 : vector<8x128xf32>
    %23 = vector.extract_strided_slice %0 {offsets = [0, 3], sizes = [8, 1], strides = [1, 1]} : vector<8x4xf32> to vector<8x1xf32>
    %24 = vector.extract_strided_slice %1 {offsets = [3, 0], sizes = [1, 128], strides = [1, 1]} : vector<4x128xf32> to vector<1x128xf32>
    %25 = vector.broadcast %23 : vector<8x1xf32> to vector<8x128xf32>
    %26 = vector.broadcast %24 : vector<1x128xf32> to vector<8x128xf32>
    %27 = arith.mulf %25, %26 : vector<8x128xf32>
    %28 = arith.addf %22, %27 : vector<8x128xf32>
    %c0_7 = arith.constant 0 : index
    %c0_8 = arith.constant 0 : index
    %29 = vector.load %arg5[%c0_7, %c0_8] : memref<1x128xf32, #tpu.memory_space<vmem>>, vector<1x128xf32>
    %30 = vector.broadcast %29 : vector<1x128xf32> to vector<8x128xf32>
    %31 = arith.addf %28, %30 : vector<8x128xf32>
    %c0_9 = arith.constant 0 : index
    %c0_10 = arith.constant 0 : index
    %32 = vector.load %arg6[%c0_9, %c0_10] : memref<8x128xf32, #tpu.memory_space<vmem>>, vector<8x128xf32>
    tpu.vector_store %arg6[%c0_9, %c0_10], %31 {strides = array<i32>} : memref<8x128xf32, #tpu.memory_space<vmem>>, vector<8x128xf32>,
    return
  }
  func.func @transform_0(%arg0: i32) -> (i32, i32) {
    %c0_i32 = arith.constant 0 : i32
    %c0_i32_0 = arith.constant 0 : i32
    return %arg0, %c0_i32 : i32, i32
  }
  func.func @transform_1(%arg0: i32) -> (i32, i32) {
    %c0_i32 = arith.constant 0 : i32
    %c0_i32_0 = arith.constant 0 : i32
    return %arg0, %c0_i32 : i32, i32
  }
  func.func @transform_2(%arg0: i32) -> (i32, i32) {
    %c0_i32 = arith.constant 0 : i32
    %c0_i32_0 = arith.constant 0 : i32
    %c0_i32_1 = arith.constant 0 : i32
    return %c0_i32, %c0_i32_0 : i32, i32
  }
  func.func @transform_3(%arg0: i32) -> (i32, i32) {
    %c0_i32 = arith.constant 0 : i32
    %c0_i32_0 = arith.constant 0 : i32
    %c0_i32_1 = arith.constant 0 : i32
    return %c0_i32, %c0_i32_0 : i32, i32
  }
  func.func @transform_4(%arg0: i32) -> (i32, i32) {
    %c0_i32 = arith.constant 0 : i32
    %c0_i32_0 = arith.constant 0 : i32
    %c0_i32_1 = arith.constant 0 : i32
    return %c0_i32, %c0_i32_0 : i32, i32
  }
  func.func @transform_5(%arg0: i32) -> (i32, i32) {
    %c0_i32 = arith.constant 0 : i32
    %c0_i32_0 = arith.constant 0 : i32
    return %arg0, %c0_i32 : i32, i32
  }
}

module attributes {stable_mosaic.version = 11 : i64} {
  func.func @_butd_kernel(%arg0: i32, %arg1: memref<8x32xf32, #tpu.memory_space<vmem>>, %arg2: memref<8x4xf32, #tpu.memory_space<vmem>>, %arg3: memref<32x128xf32, #tpu.memory_space<vmem>>, %arg4: memref<4x128xf32, #tpu.memory_space<vmem>>, %arg5: memref<1x128xf32, #tpu.memory_space<vmem>>, %arg6: memref<8x128xf32, #tpu.memory_space<vmem>>) attributes {dimension_semantics = [#tpu.dimension_semantics<parallel>], iteration_bounds = array<i64: 2>, scalar_prefetch = 0 : i64, scratch_operands = 0 : i64, tpu.core_type = #tpu.core_type<tc>, window_params = [{transform_indices = @transform_0, window_bounds = array<i64: 8, 32>}, {transform_indices = @transform_1, window_bounds = array<i64: 8, 4>}, {pipeline_mode = #tpu.pipeline_mode<synchronous>, transform_indices = @transform_2, window_bounds = array<i64: 32, 128>}, {pipeline_mode = #tpu.pipeline_mode<synchronous>, transform_indices = @transform_3, window_bounds = array<i64: 4, 128>}, {pipeline_mode = #tpu.pipeline_mode<synchronous>, transform_indices = @transform_4, window_bounds = array<i64: 1, 128>}, {transform_indices = @transform_5, window_bounds = array<i64: 8, 128>}]} {
    %c0 = arith.constant 0 : index
    %c0_0 = arith.constant 0 : index
    %0 = vector.load %arg2[%c0, %c0_0] : memref<8x4xf32, #tpu.memory_space<vmem>>, vector<8x4xf32>
    %c0_1 = arith.constant 0 : index
    %c0_2 = arith.constant 0 : index
    %1 = vector.load %arg4[%c0_1, %c0_2] : memref<4x128xf32, #tpu.memory_space<vmem>>, vector<4x128xf32>
    %c0_3 = arith.constant 0 : index
    %c0_4 = arith.constant 0 : index
    %2 = vector.load %arg1[%c0_3, %c0_4] : memref<8x32xf32, #tpu.memory_space<vmem>>, vector<8x32xf32>
    %c0_5 = arith.constant 0 : index
    %c0_6 = arith.constant 0 : index
    %3 = vector.load %arg3[%c0_5, %c0_6] : memref<32x128xf32, #tpu.memory_space<vmem>>, vector<32x128xf32>
    %cst = arith.constant dense<0.000000e+00> : vector<8x128xf32>
    %4 = tpu.matmul %2, %3, %cst {dimension_numbers = #tpu.dot_dimension_numbers<[1], [0], [0], [1], [0, 0, 1, 1], [], []>} : vector<8x32xf32>, vector<32x128xf32>, vector<8x128xf32> -> vector<8x128xf32>
    %5 = vector.extract_strided_slice %0 {offsets = [0, 0], sizes = [8, 1], strides = [1, 1]} : vector<8x4xf32> to vector<8x1xf32>
    %6 = vector.extract_strided_slice %1 {offsets = [0, 0], sizes = [1, 128], strides = [1, 1]} : vector<4x128xf32> to vector<1x128xf32>
    %7 = vector.broadcast %5 : vector<8x1xf32> to vector<8x128xf32>
    %8 = vector.broadcast %6 : vector<1x128xf32> to vector<8x128xf32>
    %9 = arith.mulf %7, %8 : vector<8x128xf32>
    %10 = arith.addf %4, %9 : vector<8x128xf32>
    %11 = vector.extract_strided_slice %0 {offsets = [0, 1], sizes = [8, 1], strides = [1, 1]} : vector<8x4xf32> to vector<8x1xf32>
    %12 = vector.extract_strided_slice %1 {offsets = [1, 0], sizes = [1, 128], strides = [1, 1]} : vector<4x128xf32> to vector<1x128xf32>
    %13 = vector.broadcast %11 : vector<8x1xf32> to vector<8x128xf32>
    %14 = vector.broadcast %12 : vector<1x128xf32> to vector<8x128xf32>
    %15 = arith.mulf %13, %14 : vector<8x128xf32>
    %16 = arith.addf %10, %15 : vector<8x128xf32>
    %17 = vector.extract_strided_slice %0 {offsets = [0, 2], sizes = [8, 1], strides = [1, 1]} : vector<8x4xf32> to vector<8x1xf32>
    %18 = vector.extract_strided_slice %1 {offsets = [2, 0], sizes = [1, 128], strides = [1, 1]} : vector<4x128xf32> to vector<1x128xf32>
    %19 = vector.broadcast %17 : vector<8x1xf32> to vector<8x128xf32>
    %20 = vector.broadcast %18 : vector<1x128xf32> to vector<8x128xf32>
    %21 = arith.mulf %19, %20 : vector<8x128xf32>
    %22 = arith.addf %16, %21 : vector<8x128xf32>
    %23 = vector.extract_strided_slice %0 {offsets = [0, 3], sizes = [8, 1], strides = [1, 1]} : vector<8x4xf32> to vector<8x1xf32>
    %24 = vector.extract_strided_slice %1 {offsets = [3, 0], sizes = [1, 128], strides = [1, 1]} : vector<4x128xf32> to vector<1x128xf32>
    %25 = vector.broadcast %23 : vector<8x1xf32> to vector<8x128xf32>
    %26 = vector.broadcast %24 : vector<1x128xf32> to vector<8x128xf32>
    %27 = arith.mulf %25, %26 : vector<8x128xf32>
    %28 = arith.addf %22, %27 : vector<8x128xf32>
    %c0_7 = arith.constant 0 : index
    %c0_8 = arith.constant 0 : index
    %29 = vector.load %arg5[%c0_7, %c0_8] : memref<1x128xf32, #tpu.memory_space<vmem>>, vector<1x128xf32>
    %30 = vector.broadcast %29 : vector<1x128xf32> to vector<8x128xf32>
    %31 = arith.addf %28, %30 : vector<8x128xf32>
    %c0_9 = arith.constant 0 : index
    %c0_10 = arith.constant 0 : index
    %32 = vector.load %arg6[%c0_9, %c0_10] : memref<8x128xf32, #tpu.memory_space<vmem>>, vector<8x128xf32>
    tpu.vector_store %arg6[%c0_9, %c0_10], %31 {strides = array<i32>} : memref<8x128xf32, #tpu.memory_space<vmem>>, vector<8x128xf32>,
    return
  }
  func.func @transform_0(%arg0: i32) -> (i32, i32) {
    %c0_i32 = arith.constant 0 : i32
    %c0_i32_0 = arith.constant 0 : i32
    return %arg0, %c0_i32 : i32, i32
  }
  func.func @transform_1(%arg0: i32) -> (i32, i32) {
    %c0_i32 = arith.constant 0 : i32
    %c0_i32_0 = arith.constant 0 : i32
    return %arg0, %c0_i32 : i32, i32
  }
  func.func @transform_2(%arg0: i32) -> (i32, i32) {
    %c0_i32 = arith.constant 0 : i32
    %c0_i32_0 = arith.constant 0 : i32
    %c0_i32_1 = arith.constant 0 : i32
    return %c0_i32, %c0_i32_0 : i32, i32
  }
  func.func @transform_3(%arg0: i32) -> (i32, i32) {
    %c0_i32 = arith.constant 0 : i32
    %c0_i32_0 = arith.constant 0 : i32
    %c0_i32_1 = arith.constant 0 : i32
    return %c0_i32, %c0_i32_0 : i32, i32
  }
  func.func @transform_4(%arg0: i32) -> (i32, i32) {
    %c0_i32 = arith.constant 0 : i32
    %c0_i32_0 = arith.constant 0 : i32
    %c0_i32_1 = arith.constant 0 : i32
    return %c0_i32, %c0_i32_0 : i32, i32
  }
  func.func @transform_5(%arg0: i32) -> (i32, i32) {
    %c0_i32 = arith.constant 0 : i32
    %c0_i32_0 = arith.constant 0 : i32
    return %arg0, %c0_i32 : i32, i32
  }
}

</mosaic_0001>

<llo_original>
// kernel: tpu_custom_call.1
$region0: #{tpu_custom_call.1}
  #allocation0 [shape = 'u32[]', space=smem, size = 0x4, offset = 0x4, fixed_abs, tag = 'smem constant byte address 0x4 - core index']
  #allocation1 [shape = 'u32[144,128]{1,0:T(1,128)}', space=vmem, size = 0x12000, scoped, tag = 'internal scratch']
  %s0 = inlined_call_operand.vmem [shape: f32[16,32], index: 0, kind: input, shape index: {}]
  %s1 = inlined_call_operand.vmem [shape: f32[16,4], index: 1, kind: input, shape index: {}]
  %s2 = inlined_call_operand.hbm [shape: f32[32,128], index: 2, kind: input, shape index: {}]
  %s3 = inlined_call_operand.vmem [shape: f32[4,128], index: 3, kind: input, shape index: {}]
  %s4 = inlined_call_operand.vmem [shape: f32[1,128], index: 4, kind: input, shape index: {}]
  %s5 = inlined_call_operand.hbm [shape: f32[16,128], index: 5, kind: output, shape index: {}]
  %s6 = sld [smem:[#allocation0]]
  $region57: #{tpu_custom_call.1} parent=0
    _
  %s8 = ssub.s32 1, %s6
  %s9 = scalar_select 0, %s8, %s6
  $region1: #{tpu_custom_call.1} parent=0
    #allocation2 [shape = 'u8[16384]{0}', space=vmem, size = 0x4000, scoped, tag = 'input window, operand 2, single buffered']
    #allocation3 [shape = 's32[2]{0}', space=sflag, size = 0x8, scoped, tag = 'scoped memory for tpu_custom_call.1']
    #allocation4 [shape = 's32[2]{0}', space=sflag, size = 0x8, scoped, tag = 'scoped memory for tpu_custom_call.1']
    #allocation5 [shape = 'u8[8192]{0}', space=vmem, size = 0x2000, scoped, tag = 'output window, operand 0']
    %10 = vsyncpa [#allocation3], 0
    %11 = vsyncpa [#allocation4], 0
    %s12 = scalar_lea.sflag [#allocation4], 1
    %13 = vsyncpa %s12, 0
    loop: start=0, step=1, limit=4
    $region2: #{tpu_custom_call.1} parent=1 // loop_pre_header
      _
    $region3: #{tpu_custom_call.1} parent=1 // loop_header
      %s15 = sphi 0, %s19
      %p16 = scmp.ge.s32.totalorder %s15, 4
      %s25 = sphi 0, %s27
      %s28 = sphi 0, %s25
      %s29 = sphi 0, %s28
      %s45 = sphi 0, %s29
      %s51 = sphi 0, %s53
      %s54 = sphi 0, %s51
      %s55 = sphi 0, %s54
      %s71 = sphi 0, %s55
      %s75 = sphi 0, %s75
      %s77 = sphi 0, %s75
      %s78 = sphi 0, %s77
      %s92 = sphi 0, %s78
      %s96 = sphi 0, %s96
      %s98 = sphi 0, %s96
      %s99 = sphi 0, %s98
      %s113 = sphi 0, %s99
      %s117 = sphi 0, %s117
      %s119 = sphi 0, %s117
      %s120 = sphi 0, %s119
      %s134 = sphi 0, %s120
      %s140 = sphi 0, %s142
      %s143 = sphi 0, %s140
      %s144 = sphi 0, %s143
      %s160 = sphi 0, %s144
    $region4: #{tpu_custom_call.1} parent=1 // loop_header_branch
      %18 = sbr.rel (%p16) target = $region8
    $region5: #{tpu_custom_call.1} parent=1 // loop_body
      %s20 = ssub.s32 %s15, 1
      %s21 = ssub.s32 %s15, 2
      %s22 = sadd.s32 %s15, 1
      %s23 = ssub.s32 %s15, %s22
      %p24 = scmp.eq.s32.totalorder %s23, 0
      %s26 = sadd.s32 %s25, 1
      %s27 = scalar_select %p24, %s25, %s26
      %p30 = pneg %p24
      %p31 = scmp.eq.s32.totalorder %s15, 1
      %p32 = por %p30, %p31
      %p33 = scmp.ne.s32.totalorder %s25, %s28
      %p34 = scmp.eq.s32.totalorder %s15, 0
      %p35 = por %p33, %p34
      %p36 = scmp.ne.s32.totalorder %s25, %s28
      %p37 = scmp.eq.s32.totalorder %s20, 1
      %p38 = por %p36, %p37
      %p39 = scmp.ne.s32.totalorder %s28, %s29
      %p40 = scmp.eq.s32.totalorder %s20, 0
      %p41 = por %p39, %p40
      %p42 = scmp.ne.s32.totalorder %s28, %s29
      %p43 = scmp.eq.s32.totalorder %s21, 1
      %p44 = por %p42, %p43
      %p46 = scmp.ne.s32.totalorder %s29, %s45
      %p47 = scmp.eq.s32.totalorder %s21, 0
      %p48 = por %p46, %p47
      %s49 = ssub.s32 %s15, %s22
      %p50 = scmp.eq.s32.totalorder %s49, 0
      %s52 = sadd.s32 %s51, 1
      %s53 = scalar_select %p50, %s51, %s52
      %p56 = pneg %p50
      %p57 = scmp.eq.s32.totalorder %s15, 1
      %p58 = por %p56, %p57
      %p59 = scmp.ne.s32.totalorder %s51, %s54
      %p60 = scmp.eq.s32.totalorder %s15, 0
      %p61 = por %p59, %p60
      %p62 = scmp.ne.s32.totalorder %s51, %s54
      %p63 = scmp.eq.s32.totalorder %s20, 1
      %p64 = por %p62, %p63
      %p65 = scmp.ne.s32.totalorder %s54, %s55
      %p66 = scmp.eq.s32.totalorder %s20, 0
      %p67 = por %p65, %p66
      %p68 = scmp.ne.s32.totalorder %s54, %s55
      %p69 = scmp.eq.s32.totalorder %s21, 1
      %p70 = por %p68, %p69
      %p72 = scmp.ne.s32.totalorder %s55, %s71
      %p73 = scmp.eq.s32.totalorder %s21, 0
      %p74 = por %p72, %p73
      %s76 = sadd.s32 %s75, 1
      %p79 = scmp.eq.s32.totalorder %s15, 1
      %p80 = scmp.ne.s32.totalorder %s75, %s77
      %p81 = scmp.eq.s32.totalorder %s15, 0
      %p82 = por %p80, %p81
      %p83 = scmp.ne.s32.totalorder %s75, %s77
      %p84 = scmp.eq.s32.totalorder %s20, 1
      %p85 = por %p83, %p84
      %p86 = scmp.ne.s32.totalorder %s77, %s78
      %p87 = scmp.eq.s32.totalorder %s20, 0
      %p88 = por %p86, %p87
      %p89 = scmp.ne.s32.totalorder %s77, %s78
      %p90 = scmp.eq.s32.totalorder %s21, 1
      %p91 = por %p89, %p90
      %p93 = scmp.ne.s32.totalorder %s78, %s92
      %p94 = scmp.eq.s32.totalorder %s21, 0
      %p95 = por %p93, %p94
      %s97 = sadd.s32 %s96, 1
      %p100 = scmp.eq.s32.totalorder %s15, 1
      %p101 = scmp.ne.s32.totalorder %s96, %s98
      %p102 = scmp.eq.s32.totalorder %s15, 0
      %p103 = por %p101, %p102
      %p104 = scmp.ne.s32.totalorder %s96, %s98
      %p105 = scmp.eq.s32.totalorder %s20, 1
      %p106 = por %p104, %p105
      %p107 = scmp.ne.s32.totalorder %s98, %s99
      %p108 = scmp.eq.s32.totalorder %s20, 0
      %p109 = por %p107, %p108
      %p110 = scmp.ne.s32.totalorder %s98, %s99
      %p111 = scmp.eq.s32.totalorder %s21, 1
      %p112 = por %p110, %p111
      %p114 = scmp.ne.s32.totalorder %s99, %s113
      %p115 = scmp.eq.s32.totalorder %s21, 0
      %p116 = por %p114, %p115
      %s118 = sadd.s32 %s117, 1
      %p121 = scmp.eq.s32.totalorder %s15, 1
      %p122 = scmp.ne.s32.totalorder %s117, %s119
      %p123 = scmp.eq.s32.totalorder %s15, 0
      %p124 = por %p122, %p123
      %p125 = scmp.ne.s32.totalorder %s117, %s119
      %p126 = scmp.eq.s32.totalorder %s20, 1
      %p127 = por %p125, %p126
      %p128 = scmp.ne.s32.totalorder %s119, %s120
      %p129 = scmp.eq.s32.totalorder %s20, 0
      %p130 = por %p128, %p129
      %p131 = scmp.ne.s32.totalorder %s119, %s120
      %p132 = scmp.eq.s32.totalorder %s21, 1
      %p133 = por %p131, %p132
      %p135 = scmp.ne.s32.totalorder %s120, %s134
      %p136 = scmp.eq.s32.totalorder %s21, 0
      %p137 = por %p135, %p136
      %s138 = ssub.s32 %s15, %s22
      %p139 = scmp.eq.s32.totalorder %s138, 0
      %s141 = sadd.s32 %s140, 1
      %s142 = scalar_select %p139, %s140, %s141
      %p145 = pneg %p139
      %p146 = scmp.eq.s32.totalorder %s15, 1
      %p147 = por %p145, %p146
      %p148 = scmp.ne.s32.totalorder %s140, %s143
      %p149 = scmp.eq.s32.totalorder %s15, 0
      %p150 = por %p148, %p149
      %p151 = scmp.ne.s32.totalorder %s140, %s143
      %p152 = scmp.eq.s32.totalorder %s20, 1
      %p153 = por %p151, %p152
      %p154 = scmp.ne.s32.totalorder %s143, %s144
      %p155 = scmp.eq.s32.totalorder %s20, 0
      %p156 = por %p154, %p155
      %p157 = scmp.ne.s32.totalorder %s143, %s144
      %p158 = scmp.eq.s32.totalorder %s21, 1
      %p159 = por %p157, %p158
      %p161 = scmp.ne.s32.totalorder %s144, %s160
      %p162 = scmp.eq.s32.totalorder %s21, 0
      %p163 = por %p161, %p162
      %p164 = scmp.le.s32.totalorder 1, %s15
      %p165 = scmp.lt.s32.totalorder %s15, 3
      %p166 = pnand %p164, %p165
      %p167 = pneg %p166
      // Predicated region
      $region9: #{tpu_custom_call.1} parent=5 // pred_check
        _
      $region10: #{tpu_custom_call.1} parent=5 // pred_check_branch
        %169 = sbr.rel (%p166) target = $region12
      $region11: #{tpu_custom_call.1} parent=5 // pred_region
        %s170 = ssub.s32 %s15, 1
        // Predicated region
        $region13: #{tpu_custom_call.1} parent=11 // pred_check
          %p171 = pneg %p88
        $region14: #{tpu_custom_call.1} parent=11 // pred_check_branch
          %173 = sbr.rel (%p171) target = $region16
        $region15: #{tpu_custom_call.1} parent=11 // pred_region
          %s175 = ssub.s32 512, 512
          %176 = vsyncadd [#allocation3], %s175
          %s177 = sshll.u32 [#allocation2], 4
          %s178 = int_to_ptr.vmem [resolvable:$true] %s177
          %183 = dma.hbm_to_vmem [thread:$0]  %s2, 512, %s178, [#allocation3], 128, 128, 8
        $region16: #{tpu_custom_call.1} parent=11 // pred_fallthru
          _
        // Predicated region
        $region17: #{tpu_custom_call.1} parent=11 // pred_check
          %p184 = pneg %p109
        $region18: #{tpu_custom_call.1} parent=11 // pred_check_branch
          %186 = sbr.rel (%p184) target = $region20
        $region19: #{tpu_custom_call.1} parent=11 // pred_region
          _
        $region20: #{tpu_custom_call.1} parent=11 // pred_fallthru
          _
        // Predicated region
        $region21: #{tpu_custom_call.1} parent=11 // pred_check
          %p187 = pneg %p130
        $region22: #{tpu_custom_call.1} parent=11 // pred_check_branch
          %189 = sbr.rel (%p187) target = $region24
        $region23: #{tpu_custom_call.1} parent=11 // pred_region
          _
        $region24: #{tpu_custom_call.1} parent=11 // pred_fallthru
          _
      $region12: #{tpu_custom_call.1} parent=5 // pred_fallthru
        _
      %p190 = scmp.lt.s32.totalorder %s15, 2
      // Predicated region
      $region25: #{tpu_custom_call.1} parent=5 // pred_check
        %p191 = pneg %p190
      $region26: #{tpu_custom_call.1} parent=5 // pred_check_branch
        %193 = sbr.rel (%p191) target = $region28
      $region27: #{tpu_custom_call.1} parent=5 // pred_region
        // Predicated region
        $region29: #{tpu_custom_call.1} parent=27 // pred_check
          %p194 = pneg %p35
        $region30: #{tpu_custom_call.1} parent=27 // pred_check_branch
          %196 = sbr.rel (%p194) target = $region32
        $region31: #{tpu_custom_call.1} parent=27 // pred_region
          %p197 = scmp.lt.s32.totalorder %s15, 1
          %s198 = scalar_select %p197, %s15, 1
          %s199 = smul.addr %s198, 8
          %s200 = scalar_lea.vmem %s0, %s199
        $region32: #{tpu_custom_call.1} parent=27 // pred_fallthru
          _
        // Predicated region
        $region33: #{tpu_custom_call.1} parent=27 // pred_check
          %p201 = pneg %p61
        $region34: #{tpu_custom_call.1} parent=27 // pred_check_branch
          %203 = sbr.rel (%p201) target = $region36
        $region35: #{tpu_custom_call.1} parent=27 // pred_region
          %p204 = scmp.lt.s32.totalorder %s15, 1
          %s205 = scalar_select %p204, %s15, 1
          %s206 = smul.addr %s205, 8
          %s207 = scalar_lea.vmem %s1, %s206
        $region36: #{tpu_custom_call.1} parent=27 // pred_fallthru
          _
      $region28: #{tpu_custom_call.1} parent=5 // pred_fallthru
        _
      %p208 = scmp.le.s32.totalorder 1, %s15
      %p209 = scmp.lt.s32.totalorder %s15, 3
      %p210 = pnand %p208, %p209
      %p211 = pneg %p210
      // Predicated region
      $region37: #{tpu_custom_call.1} parent=5 // pred_check
        _
      $region38: #{tpu_custom_call.1} parent=5 // pred_check_branch
        %213 = sbr.rel (%p210) target = $region40
      $region39: #{tpu_custom_call.1} parent=5 // pred_region
        %s214 = ssub.s32 %s15, 1
        // Predicated region
        $region41: #{tpu_custom_call.1} parent=39 // pred_check
          %p215 = pneg %p88
        $region42: #{tpu_custom_call.1} parent=39 // pred_check_branch
          %217 = sbr.rel (%p215) target = $region44
        $region43: #{tpu_custom_call.1} parent=39 // pred_region
          %218 = dma.done [#allocation3], 512
        $region44: #{tpu_custom_call.1} parent=39 // pred_fallthru
          _
        %p219 = scmp.lt.s32.totalorder %s20, 1
        %s220 = scalar_select %p219, %s20, 1
        %s221 = smul.addr %s220, 8
        %s222 = scalar_lea.vmem %s0, %s221
        %p223 = pneg %p41
        %p224 = pneg %p38
        %p225 = scmp.lt.s32.totalorder %s20, 1
        %s226 = scalar_select %p225, %s20, 1
        %s227 = smul.addr %s226, 8
        %s228 = scalar_lea.vmem %s1, %s227
        %p229 = pneg %p67
        %p230 = pneg %p64
        %p231 = pneg %p88
        %p232 = pneg %p85
        %p233 = pneg %p109
        %p234 = pneg %p106
        %p235 = pneg %p130
        %p236 = pneg %p127
        %p237 = pneg %p156
        %p238 = pneg %p153
        %s239 = sand.u32 %s143, 1
        %s240 = scalar_lea.sflag [#allocation4], %s239
        %s241 = sand.u32 %s143, 1
        %s242 = smul.addr %s241, 8
        %s243 = scalar_lea.vmem [#allocation5], %s242
        %p244 = scmp.lt.s32.totalorder %s20, 1
        %s245 = scalar_select %p244, %s20, 1
        %s246 = smul.addr %s245, 8
        %s247 = scalar_lea.vmem %s0, %s246
        %p248 = scmp.lt.s32.totalorder %s20, 1
        %s249 = scalar_select %p248, %s20, 1
        %s250 = smul.addr %s249, 8
        %s251 = scalar_lea.vmem %s1, %s250
        %v252 = vld [vmem:[%s251] sm:$0xff]
        %v253 = vld [vmem:[%s3] sm:$0xf]
        %v254 = vld [vmem:[%s247] sm:$0xff]
        %v255 = vld [vmem:[#allocation2] sm:$0xff]
        %v256 = vld [vmem:[#allocation2 + $0x8] sm:$0xff]
        %v257 = vld [vmem:[#allocation2 + $0x10] sm:$0xff]
        %v258 = vld [vmem:[#allocation2 + $0x18] sm:$0xff]
        %260 = vset.pattern.permute.xlu0 0
        %261 = vperm.xlu0 %260, %v252
        %v262 = vpop.permute.xlu0 %261
        %v264 = vlaneseq
        %v265 = vshrl.u32 %v264, 7
        %v266 = vsub.s32 0, %v265
        %v267 = vrot.slane %v253, %v266
        %v268 = vmul.f32 %v262, %v267
        %vm269 = vcmask 261120
        %v271 = vsel %vm269, %v254, 0
        %273 = vmatprep.subr.mxu0 0.0
        %274 = vmatpush1.msra.mxu0 %v255
        %275 = vmatprep.subr.mxu0 0.0
        %276 = vmatpush1.msra.mxu0 %v256
        %277 = vmatprep.subr.mxu0 0.0
        %278 = vmatpush1.msra.mxu0 %v257
        %279 = vmatprep.subr.mxu0 0.0
        %280 = vmatpush1.msra.mxu0 %v258
        %281 = vmatprep.subr.mxu0 0.0
        %282 = vmatpush1.msra.mxu0 0.0
        %283 = vmatprep.subr.mxu0 0.0
        %284 = vmatpush1.msra.mxu0 0.0
        %285 = vmatprep.subr.mxu0 0.0
        %286 = vmatpush1.msra.mxu0 0.0
        %287 = vmatprep.subr.mxu0 0.0
        %288 = vmatpush1.msra.mxu0 0.0
        %289 = vmatprep.subr.mxu0 0.0
        %290 = vmatpush1.msra.mxu0 0.0
        %291 = vmatprep.subr.mxu0 0.0
        %292 = vmatpush1.msra.mxu0 0.0
        %293 = vmatprep.subr.mxu0 0.0
        %294 = vmatpush1.msra.mxu0 0.0
        %295 = vmatprep.subr.mxu0 0.0
        %296 = vmatpush1.msra.mxu0 0.0
        %297 = vmatprep.subr.mxu0 0.0
        %298 = vmatpush1.msra.mxu0 0.0
        %299 = vmatprep.subr.mxu0 0.0
        %300 = vmatpush1.msra.mxu0 0.0
        %301 = vmatprep.subr.mxu0 0.0
        %302 = vmatpush1.msra.mxu0 0.0
        %303 = vmatprep.subr.mxu0 0.0
        %304 = vmatpush1.msra.mxu0 0.0
        %305 = vmatprep.subr.mxu0 0.0
        %306 = vmatpush1.msra.mxu0 0.0
        %307 = vmatprep.subr.mxu0 0.0
        %308 = vmatpush1.msra.mxu0 0.0
        %309 = vmatprep.subr.mxu0 0.0
        %310 = vmatpush1.msra.mxu0 0.0
        %311 = vmatprep.subr.mxu0 0.0
        %312 = vmatpush1.msra.mxu0 0.0
        %313 = vmatprep.subr.mxu0 0.0
        %314 = vmatpush1.msra.mxu0 0.0
        %315 = vmatprep.subr.mxu0 0.0
        %316 = vmatpush1.msra.mxu0 0.0
        %317 = vmatprep.subr.mxu0 0.0
        %318 = vmatpush1.msra.mxu0 0.0
        %319 = vmatprep.subr.mxu0 0.0
        %320 = vmatpush1.msra.mxu0 0.0
        %321 = vmatprep.subr.mxu0 0.0
        %322 = vmatpush1.msra.mxu0 0.0
        %323 = vmatprep.subr.mxu0 0.0
        %324 = vmatpush1.msra.mxu0 0.0
        %325 = vmatprep.subr.mxu0 0.0
        %326 = vmatpush1.msra.mxu0 0.0
        %327 = vmatprep.subr.mxu0 0.0
        %328 = vmatpush1.msra.mxu0 0.0
        %329 = vmatprep.subr.mxu0 0.0
        %330 = vmatpush1.msra.mxu0 0.0
        %331 = vmatprep.subr.mxu0 0.0
        %332 = vmatpush1.msra.mxu0 0.0
        %333 = vmatprep.subr.mxu0 0.0
        %334 = vmatpush1.msra.mxu0 0.0
        %335 = vmatprep.subr.mxu0 0.0
        %336 = vmatpush1.msra.mxu0 0.0
        %337 = vmatprep.mubr.f32.mxu0 0.0
        %338 = vmatmul.mubr.f32.gmra.mrb[0].mxu0 %v271
        %v339 = vpop.f32.mrb[0].mxu0
        %v340 = vadd.f32 %v268, %v339
        %v341 = vpop.f32.mrb[0].mxu0
        %342 = vdwg.mxu0
        %343 = vset.pattern.permute.xlu0 1
        %344 = vperm.xlu0 %343, %v252
        %v345 = vpop.permute.xlu0 %344
        %v347 = vlaneseq
        %v348 = vshrl.u32 %v347, 7
        %v349 = vsub.s32 1, %v348
        %v350 = vrot.slane %v253, %v349
        %v351 = vmul.f32 %v345, %v350
        %v352 = vadd.f32 %v340, %v351
        %353 = vset.pattern.permute.xlu0 2
        %354 = vperm.xlu0 %353, %v252
        %v355 = vpop.permute.xlu0 %354
        %v357 = vlaneseq
        %v358 = vshrl.u32 %v357, 7
        %v359 = vsub.s32 2, %v358
        %v360 = vrot.slane %v253, %v359
        %v361 = vmul.f32 %v355, %v360
        %v362 = vadd.f32 %v352, %v361
        %363 = vset.pattern.permute.xlu0 3
        %364 = vperm.xlu0 %363, %v252
        %v365 = vpop.permute.xlu0 %364
        %v367 = vlaneseq
        %v368 = vshrl.u32 %v367, 7
        %v369 = vsub.s32 3, %v368
        %v370 = vrot.slane %v253, %v369
        %v371 = vmul.f32 %v365, %v370
        %v372 = vadd.f32 %v362, %v371
        %v373 = vld [vmem:[%s4] sm:$0x1]
        %v375 = vlaneseq
        %v376 = vshrl.u32 %v375, 7
        %v377 = vsub.s32 0, %v376
        %v378 = vrot.slane %v373, %v377
        %v380 = vadd.f32 %v372, %v378
        %381 = vst [vmem:[%s243] sm:$0xff] %v380
        %s382 = sand.u32 %s143, 1
        %s383 = scalar_lea.sflag [#allocation4], %s382
        %s384 = sand.u32 %s143, 1
        %s385 = smul.addr %s384, 8
        %s386 = scalar_lea.vmem [#allocation5], %s385
        // Predicated region
        $region45: #{tpu_custom_call.1} parent=39 // pred_check
          %p387 = pneg %p153
        $region46: #{tpu_custom_call.1} parent=39 // pred_check_branch
          %389 = sbr.rel (%p387) target = $region48
        $region47: #{tpu_custom_call.1} parent=39 // pred_region
          %s391 = ssub.s32 128, 128
          %392 = vsyncadd %s383, %s391
          %s393 = smul.addr %s20, 128
          %s394 = scalar_lea.hbm %s5, %s393
          %s396 = sshll.u32 %s386, 4
          %s397 = int_to_ptr.vmem [resolvable:$true] %s396
          %399 = dma.vmem_to_hbm [thread:$0]  %s397, 128, %s394, %s383
        $region48: #{tpu_custom_call.1} parent=39 // pred_fallthru
          _
      $region40: #{tpu_custom_call.1} parent=5 // pred_fallthru
        _
      %p400 = scmp.le.s32.totalorder 2, %s15
      // Predicated region
      $region49: #{tpu_custom_call.1} parent=5 // pred_check
        %p401 = pneg %p400
      $region50: #{tpu_custom_call.1} parent=5 // pred_check_branch
        %403 = sbr.rel (%p401) target = $region52
      $region51: #{tpu_custom_call.1} parent=5 // pred_region
        %s404 = ssub.s32 %s15, 2
        // Predicated region
        $region53: #{tpu_custom_call.1} parent=51 // pred_check
          %p405 = pneg %p159
        $region54: #{tpu_custom_call.1} parent=51 // pred_check_branch
          %407 = sbr.rel (%p405) target = $region56
        $region55: #{tpu_custom_call.1} parent=51 // pred_region
          %s408 = sand.u32 %s144, 1
          %s409 = scalar_lea.sflag [#allocation4], %s408
          %s410 = sand.u32 %s144, 1
          %s411 = smul.addr %s410, 8
          %s412 = scalar_lea.vmem [#allocation5], %s411
          %413 = dma.done %s409, 128
        $region56: #{tpu_custom_call.1} parent=51 // pred_fallthru
          _
      $region52: #{tpu_custom_call.1} parent=5 // pred_fallthru
        _
    $region6: #{tpu_custom_call.1} parent=1 // loop_footer
      %s19 = sadd.s32 1, %s15
    $region7: #{tpu_custom_call.1} parent=1 // loop_footer_branch
      %14 = sbr.rel target = $region3
    $region8: #{tpu_custom_call.1} parent=1 // loop_exit
      _
    %414 = vsyncpa [#allocation3], 1
    %s415 = scalar_lea.sflag [#allocation3], 1
    %416 = vsyncpa %s415, 1
    %417 = vsyncpa [#allocation4], 1
    %s418 = scalar_lea.sflag [#allocation4], 1
    %419 = vsyncpa %s418, 1

// kernel: tpu_custom_call.1
$region0: #{tpu_custom_call.1}
  #allocation0 [shape = 'u32[]', space=smem, size = 0x4, offset = 0x4, fixed_abs, tag = 'smem constant byte address 0x4 - core index']
  #allocation1 [shape = 'u32[144,128]{1,0:T(1,128)}', space=vmem, size = 0x12000, scoped, tag = 'internal scratch']
  %s0 = inlined_call_operand.vmem [shape: f32[16,32], index: 0, kind: input, shape index: {}]
  %s1 = inlined_call_operand.vmem [shape: f32[16,4], index: 1, kind: input, shape index: {}]
  %s2 = inlined_call_operand.hbm [shape: f32[32,128], index: 2, kind: input, shape index: {}]
  %s3 = inlined_call_operand.vmem [shape: f32[4,128], index: 3, kind: input, shape index: {}]
  %s4 = inlined_call_operand.vmem [shape: f32[1,128], index: 4, kind: input, shape index: {}]
  %s5 = inlined_call_operand.hbm [shape: f32[16,128], index: 5, kind: output, shape index: {}]
  %s6 = sld [smem:[#allocation0]]
  $region57: #{tpu_custom_call.1} parent=0
    _
  %s8 = ssub.s32 1, %s6
  %s9 = scalar_select 0, %s8, %s6
  $region1: #{tpu_custom_call.1} parent=0
    #allocation2 [shape = 'u8[16384]{0}', space=vmem, size = 0x4000, scoped, tag = 'input window, operand 2, single buffered']
    #allocation3 [shape = 's32[2]{0}', space=sflag, size = 0x8, scoped, tag = 'scoped memory for tpu_custom_call.1']
    #allocation4 [shape = 's32[2]{0}', space=sflag, size = 0x8, scoped, tag = 'scoped memory for tpu_custom_call.1']
    #allocation5 [shape = 'u8[8192]{0}', space=vmem, size = 0x2000, scoped, tag = 'output window, operand 0']
    %10 = vsyncpa [#allocation3], 0
    %11 = vsyncpa [#allocation4], 0
    %s12 = scalar_lea.sflag [#allocation4], 1
    %13 = vsyncpa %s12, 0
    loop: start=0, step=1, limit=4
    $region2: #{tpu_custom_call.1} parent=1 // loop_pre_header
      _
    $region3: #{tpu_custom_call.1} parent=1 // loop_header
      %s15 = sphi 0, %s19
      %p16 = scmp.ge.s32.totalorder %s15, 4
      %s25 = sphi 0, %s27
      %s28 = sphi 0, %s25
      %s29 = sphi 0, %s28
      %s45 = sphi 0, %s29
      %s51 = sphi 0, %s53
      %s54 = sphi 0, %s51
      %s55 = sphi 0, %s54
      %s71 = sphi 0, %s55
      %s75 = sphi 0, %s75
      %s77 = sphi 0, %s75
      %s78 = sphi 0, %s77
      %s92 = sphi 0, %s78
      %s96 = sphi 0, %s96
      %s98 = sphi 0, %s96
      %s99 = sphi 0, %s98
      %s113 = sphi 0, %s99
      %s117 = sphi 0, %s117
      %s119 = sphi 0, %s117
      %s120 = sphi 0, %s119
      %s134 = sphi 0, %s120
      %s140 = sphi 0, %s142
      %s143 = sphi 0, %s140
      %s144 = sphi 0, %s143
      %s160 = sphi 0, %s144
    $region4: #{tpu_custom_call.1} parent=1 // loop_header_branch
      %18 = sbr.rel (%p16) target = $region8
    $region5: #{tpu_custom_call.1} parent=1 // loop_body
      %s20 = ssub.s32 %s15, 1
      %s21 = ssub.s32 %s15, 2
      %s22 = sadd.s32 %s15, 1
      %s23 = ssub.s32 %s15, %s22
      %p24 = scmp.eq.s32.totalorder %s23, 0
      %s26 = sadd.s32 %s25, 1
      %s27 = scalar_select %p24, %s25, %s26
      %p30 = pneg %p24
      %p31 = scmp.eq.s32.totalorder %s15, 1
      %p32 = por %p30, %p31
      %p33 = scmp.ne.s32.totalorder %s25, %s28
      %p34 = scmp.eq.s32.totalorder %s15, 0
      %p35 = por %p33, %p34
      %p36 = scmp.ne.s32.totalorder %s25, %s28
      %p37 = scmp.eq.s32.totalorder %s20, 1
      %p38 = por %p36, %p37
      %p39 = scmp.ne.s32.totalorder %s28, %s29
      %p40 = scmp.eq.s32.totalorder %s20, 0
      %p41 = por %p39, %p40
      %p42 = scmp.ne.s32.totalorder %s28, %s29
      %p43 = scmp.eq.s32.totalorder %s21, 1
      %p44 = por %p42, %p43
      %p46 = scmp.ne.s32.totalorder %s29, %s45
      %p47 = scmp.eq.s32.totalorder %s21, 0
      %p48 = por %p46, %p47
      %s49 = ssub.s32 %s15, %s22
      %p50 = scmp.eq.s32.totalorder %s49, 0
      %s52 = sadd.s32 %s51, 1
      %s53 = scalar_select %p50, %s51, %s52
      %p56 = pneg %p50
      %p57 = scmp.eq.s32.totalorder %s15, 1
      %p58 = por %p56, %p57
      %p59 = scmp.ne.s32.totalorder %s51, %s54
      %p60 = scmp.eq.s32.totalorder %s15, 0
      %p61 = por %p59, %p60
      %p62 = scmp.ne.s32.totalorder %s51, %s54
      %p63 = scmp.eq.s32.totalorder %s20, 1
      %p64 = por %p62, %p63
      %p65 = scmp.ne.s32.totalorder %s54, %s55
      %p66 = scmp.eq.s32.totalorder %s20, 0
      %p67 = por %p65, %p66
      %p68 = scmp.ne.s32.totalorder %s54, %s55
      %p69 = scmp.eq.s32.totalorder %s21, 1
      %p70 = por %p68, %p69
      %p72 = scmp.ne.s32.totalorder %s55, %s71
      %p73 = scmp.eq.s32.totalorder %s21, 0
      %p74 = por %p72, %p73
      %s76 = sadd.s32 %s75, 1
      %p79 = scmp.eq.s32.totalorder %s15, 1
      %p80 = scmp.ne.s32.totalorder %s75, %s77
      %p81 = scmp.eq.s32.totalorder %s15, 0
      %p82 = por %p80, %p81
      %p83 = scmp.ne.s32.totalorder %s75, %s77
      %p84 = scmp.eq.s32.totalorder %s20, 1
      %p85 = por %p83, %p84
      %p86 = scmp.ne.s32.totalorder %s77, %s78
      %p87 = scmp.eq.s32.totalorder %s20, 0
      %p88 = por %p86, %p87
      %p89 = scmp.ne.s32.totalorder %s77, %s78
      %p90 = scmp.eq.s32.totalorder %s21, 1
      %p91 = por %p89, %p90
      %p93 = scmp.ne.s32.totalorder %s78, %s92
      %p94 = scmp.eq.s32.totalorder %s21, 0
      %p95 = por %p93, %p94
      %s97 = sadd.s32 %s96, 1
      %p100 = scmp.eq.s32.totalorder %s15, 1
      %p101 = scmp.ne.s32.totalorder %s96, %s98
      %p102 = scmp.eq.s32.totalorder %s15, 0
      %p103 = por %p101, %p102
      %p104 = scmp.ne.s32.totalorder %s96, %s98
      %p105 = scmp.eq.s32.totalorder %s20, 1
      %p106 = por %p104, %p105
      %p107 = scmp.ne.s32.totalorder %s98, %s99
      %p108 = scmp.eq.s32.totalorder %s20, 0
      %p109 = por %p107, %p108
      %p110 = scmp.ne.s32.totalorder %s98, %s99
      %p111 = scmp.eq.s32.totalorder %s21, 1
      %p112 = por %p110, %p111
      %p114 = scmp.ne.s32.totalorder %s99, %s113
      %p115 = scmp.eq.s32.totalorder %s21, 0
      %p116 = por %p114, %p115
      %s118 = sadd.s32 %s117, 1
      %p121 = scmp.eq.s32.totalorder %s15, 1
      %p122 = scmp.ne.s32.totalorder %s117, %s119
      %p123 = scmp.eq.s32.totalorder %s15, 0
      %p124 = por %p122, %p123
      %p125 = scmp.ne.s32.totalorder %s117, %s119
      %p126 = scmp.eq.s32.totalorder %s20, 1
      %p127 = por %p125, %p126
      %p128 = scmp.ne.s32.totalorder %s119, %s120
      %p129 = scmp.eq.s32.totalorder %s20, 0
      %p130 = por %p128, %p129
      %p131 = scmp.ne.s32.totalorder %s119, %s120
      %p132 = scmp.eq.s32.totalorder %s21, 1
      %p133 = por %p131, %p132
      %p135 = scmp.ne.s32.totalorder %s120, %s134
      %p136 = scmp.eq.s32.totalorder %s21, 0
      %p137 = por %p135, %p136
      %s138 = ssub.s32 %s15, %s22
      %p139 = scmp.eq.s32.totalorder %s138, 0
      %s141 = sadd.s32 %s140, 1
      %s142 = scalar_select %p139, %s140, %s141
      %p145 = pneg %p139
      %p146 = scmp.eq.s32.totalorder %s15, 1
      %p147 = por %p145, %p146
      %p148 = scmp.ne.s32.totalorder %s140, %s143
      %p149 = scmp.eq.s32.totalorder %s15, 0
      %p150 = por %p148, %p149
      %p151 = scmp.ne.s32.totalorder %s140, %s143
      %p152 = scmp.eq.s32.totalorder %s20, 1
      %p153 = por %p151, %p152
      %p154 = scmp.ne.s32.totalorder %s143, %s144
      %p155 = scmp.eq.s32.totalorder %s20, 0
      %p156 = por %p154, %p155
      %p157 = scmp.ne.s32.totalorder %s143, %s144
      %p158 = scmp.eq.s32.totalorder %s21, 1
      %p159 = por %p157, %p158
      %p161 = scmp.ne.s32.totalorder %s144, %s160
      %p162 = scmp.eq.s32.totalorder %s21, 0
      %p163 = por %p161, %p162
      %p164 = scmp.le.s32.totalorder 1, %s15
      %p165 = scmp.lt.s32.totalorder %s15, 3
      %p166 = pnand %p164, %p165
      %p167 = pneg %p166
      // Predicated region
      $region9: #{tpu_custom_call.1} parent=5 // pred_check
        _
      $region10: #{tpu_custom_call.1} parent=5 // pred_check_branch
        %169 = sbr.rel (%p166) target = $region12
      $region11: #{tpu_custom_call.1} parent=5 // pred_region
        %s170 = ssub.s32 %s15, 1
        // Predicated region
        $region13: #{tpu_custom_call.1} parent=11 // pred_check
          %p171 = pneg %p88
        $region14: #{tpu_custom_call.1} parent=11 // pred_check_branch
          %173 = sbr.rel (%p171) target = $region16
        $region15: #{tpu_custom_call.1} parent=11 // pred_region
          %s175 = ssub.s32 512, 512
          %176 = vsyncadd [#allocation3], %s175
          %s177 = sshll.u32 [#allocation2], 4
          %s178 = int_to_ptr.vmem [resolvable:$true] %s177
          %183 = dma.hbm_to_vmem [thread:$0]  %s2, 512, %s178, [#allocation3], 128, 128, 8
        $region16: #{tpu_custom_call.1} parent=11 // pred_fallthru
          _
        // Predicated region
        $region17: #{tpu_custom_call.1} parent=11 // pred_check
          %p184 = pneg %p109
        $region18: #{tpu_custom_call.1} parent=11 // pred_check_branch
          %186 = sbr.rel (%p184) target = $region20
        $region19: #{tpu_custom_call.1} parent=11 // pred_region
          _
        $region20: #{tpu_custom_call.1} parent=11 // pred_fallthru
          _
        // Predicated region
        $region21: #{tpu_custom_call.1} parent=11 // pred_check
          %p187 = pneg %p130
        $region22: #{tpu_custom_call.1} parent=11 // pred_check_branch
          %189 = sbr.rel (%p187) target = $region24
        $region23: #{tpu_custom_call.1} parent=11 // pred_region
          _
        $region24: #{tpu_custom_call.1} parent=11 // pred_fallthru
          _
      $region12: #{tpu_custom_call.1} parent=5 // pred_fallthru
        _
      %p190 = scmp.lt.s32.totalorder %s15, 2
      // Predicated region
      $region25: #{tpu_custom_call.1} parent=5 // pred_check
        %p191 = pneg %p190
      $region26: #{tpu_custom_call.1} parent=5 // pred_check_branch
        %193 = sbr.rel (%p191) target = $region28
      $region27: #{tpu_custom_call.1} parent=5 // pred_region
        // Predicated region
        $region29: #{tpu_custom_call.1} parent=27 // pred_check
          %p194 = pneg %p35
        $region30: #{tpu_custom_call.1} parent=27 // pred_check_branch
          %196 = sbr.rel (%p194) target = $region32
        $region31: #{tpu_custom_call.1} parent=27 // pred_region
          %p197 = scmp.lt.s32.totalorder %s15, 1
          %s198 = scalar_select %p197, %s15, 1
          %s199 = smul.addr %s198, 8
          %s200 = scalar_lea.vmem %s0, %s199
        $region32: #{tpu_custom_call.1} parent=27 // pred_fallthru
          _
        // Predicated region
        $region33: #{tpu_custom_call.1} parent=27 // pred_check
          %p201 = pneg %p61
        $region34: #{tpu_custom_call.1} parent=27 // pred_check_branch
          %203 = sbr.rel (%p201) target = $region36
        $region35: #{tpu_custom_call.1} parent=27 // pred_region
          %p204 = scmp.lt.s32.totalorder %s15, 1
          %s205 = scalar_select %p204, %s15, 1
          %s206 = smul.addr %s205, 8
          %s207 = scalar_lea.vmem %s1, %s206
        $region36: #{tpu_custom_call.1} parent=27 // pred_fallthru
          _
      $region28: #{tpu_custom_call.1} parent=5 // pred_fallthru
        _
      %p208 = scmp.le.s32.totalorder 1, %s15
      %p209 = scmp.lt.s32.totalorder %s15, 3
      %p210 = pnand %p208, %p209
      %p211 = pneg %p210
      // Predicated region
      $region37: #{tpu_custom_call.1} parent=5 // pred_check
        _
      $region38: #{tpu_custom_call.1} parent=5 // pred_check_branch
        %213 = sbr.rel (%p210) target = $region40
      $region39: #{tpu_custom_call.1} parent=5 // pred_region
        %s214 = ssub.s32 %s15, 1
        // Predicated region
        $region41: #{tpu_custom_call.1} parent=39 // pred_check
          %p215 = pneg %p88
        $region42: #{tpu_custom_call.1} parent=39 // pred_check_branch
          %217 = sbr.rel (%p215) target = $region44
        $region43: #{tpu_custom_call.1} parent=39 // pred_region
          %218 = dma.done [#allocation3], 512
        $region44: #{tpu_custom_call.1} parent=39 // pred_fallthru
          _
        %p219 = scmp.lt.s32.totalorder %s20, 1
        %s220 = scalar_select %p219, %s20, 1
        %s221 = smul.addr %s220, 8
        %s222 = scalar_lea.vmem %s0, %s221
        %p223 = pneg %p41
        %p224 = pneg %p38
        %p225 = scmp.lt.s32.totalorder %s20, 1
        %s226 = scalar_select %p225, %s20, 1
        %s227 = smul.addr %s226, 8
        %s228 = scalar_lea.vmem %s1, %s227
        %p229 = pneg %p67
        %p230 = pneg %p64
        %p231 = pneg %p88
        %p232 = pneg %p85
        %p233 = pneg %p109
        %p234 = pneg %p106
        %p235 = pneg %p130
        %p236 = pneg %p127
        %p237 = pneg %p156
        %p238 = pneg %p153
        %s239 = sand.u32 %s143, 1
        %s240 = scalar_lea.sflag [#allocation4], %s239
        %s241 = sand.u32 %s143, 1
        %s242 = smul.addr %s241, 8
        %s243 = scalar_lea.vmem [#allocation5], %s242
        %p244 = scmp.lt.s32.totalorder %s20, 1
        %s245 = scalar_select %p244, %s20, 1
        %s246 = smul.addr %s245, 8
        %s247 = scalar_lea.vmem %s0, %s246
        %p248 = scmp.lt.s32.totalorder %s20, 1
        %s249 = scalar_select %p248, %s20, 1
        %s250 = smul.addr %s249, 8
        %s251 = scalar_lea.vmem %s1, %s250
        %v252 = vld [vmem:[%s251] sm:$0xff]
        %v253 = vld [vmem:[%s3] sm:$0xf]
        %v254 = vld [vmem:[%s247] sm:$0xff]
        %v255 = vld [vmem:[#allocation2] sm:$0xff]
        %v256 = vld [vmem:[#allocation2 + $0x8] sm:$0xff]
        %v257 = vld [vmem:[#allocation2 + $0x10] sm:$0xff]
        %v258 = vld [vmem:[#allocation2 + $0x18] sm:$0xff]
        %260 = vset.pattern.permute.xlu0 0
        %261 = vperm.xlu0 %260, %v252
        %v262 = vpop.permute.xlu0 %261
        %v264 = vlaneseq
        %v265 = vshrl.u32 %v264, 7
        %v266 = vsub.s32 0, %v265
        %v267 = vrot.slane %v253, %v266
        %v268 = vmul.f32 %v262, %v267
        %vm269 = vcmask 261120
        %v271 = vsel %vm269, %v254, 0
        %273 = vmatprep.subr.mxu0 0.0
        %274 = vmatpush1.msra.mxu0 %v255
        %275 = vmatprep.subr.mxu0 0.0
        %276 = vmatpush1.msra.mxu0 %v256
        %277 = vmatprep.subr.mxu0 0.0
        %278 = vmatpush1.msra.mxu0 %v257
        %279 = vmatprep.subr.mxu0 0.0
        %280 = vmatpush1.msra.mxu0 %v258
        %281 = vmatprep.subr.mxu0 0.0
        %282 = vmatpush1.msra.mxu0 0.0
        %283 = vmatprep.subr.mxu0 0.0
        %284 = vmatpush1.msra.mxu0 0.0
        %285 = vmatprep.subr.mxu0 0.0
        %286 = vmatpush1.msra.mxu0 0.0
        %287 = vmatprep.subr.mxu0 0.0
        %288 = vmatpush1.msra.mxu0 0.0
        %289 = vmatprep.subr.mxu0 0.0
        %290 = vmatpush1.msra.mxu0 0.0
        %291 = vmatprep.subr.mxu0 0.0
        %292 = vmatpush1.msra.mxu0 0.0
        %293 = vmatprep.subr.mxu0 0.0
        %294 = vmatpush1.msra.mxu0 0.0
        %295 = vmatprep.subr.mxu0 0.0
        %296 = vmatpush1.msra.mxu0 0.0
        %297 = vmatprep.subr.mxu0 0.0
        %298 = vmatpush1.msra.mxu0 0.0
        %299 = vmatprep.subr.mxu0 0.0
        %300 = vmatpush1.msra.mxu0 0.0
        %301 = vmatprep.subr.mxu0 0.0
        %302 = vmatpush1.msra.mxu0 0.0
        %303 = vmatprep.subr.mxu0 0.0
        %304 = vmatpush1.msra.mxu0 0.0
        %305 = vmatprep.subr.mxu0 0.0
        %306 = vmatpush1.msra.mxu0 0.0
        %307 = vmatprep.subr.mxu0 0.0
        %308 = vmatpush1.msra.mxu0 0.0
        %309 = vmatprep.subr.mxu0 0.0
        %310 = vmatpush1.msra.mxu0 0.0
        %311 = vmatprep.subr.mxu0 0.0
        %312 = vmatpush1.msra.mxu0 0.0
        %313 = vmatprep.subr.mxu0 0.0
        %314 = vmatpush1.msra.mxu0 0.0
        %315 = vmatprep.subr.mxu0 0.0
        %316 = vmatpush1.msra.mxu0 0.0
        %317 = vmatprep.subr.mxu0 0.0
        %318 = vmatpush1.msra.mxu0 0.0
        %319 = vmatprep.subr.mxu0 0.0
        %320 = vmatpush1.msra.mxu0 0.0
        %321 = vmatprep.subr.mxu0 0.0
        %322 = vmatpush1.msra.mxu0 0.0
        %323 = vmatprep.subr.mxu0 0.0
        %324 = vmatpush1.msra.mxu0 0.0
        %325 = vmatprep.subr.mxu0 0.0
        %326 = vmatpush1.msra.mxu0 0.0
        %327 = vmatprep.subr.mxu0 0.0
        %328 = vmatpush1.msra.mxu0 0.0
        %329 = vmatprep.subr.mxu0 0.0
        %330 = vmatpush1.msra.mxu0 0.0
        %331 = vmatprep.subr.mxu0 0.0
        %332 = vmatpush1.msra.mxu0 0.0
        %333 = vmatprep.subr.mxu0 0.0
        %334 = vmatpush1.msra.mxu0 0.0
        %335 = vmatprep.subr.mxu0 0.0
        %336 = vmatpush1.msra.mxu0 0.0
        %337 = vmatprep.mubr.f32.mxu0 0.0
        %338 = vmatmul.mubr.f32.gmra.mrb[0].mxu0 %v271
        %v339 = vpop.f32.mrb[0].mxu0
        %v340 = vadd.f32 %v268, %v339
        %v341 = vpop.f32.mrb[0].mxu0
        %342 = vdwg.mxu0
        %343 = vset.pattern.permute.xlu0 1
        %344 = vperm.xlu0 %343, %v252
        %v345 = vpop.permute.xlu0 %344
        %v347 = vlaneseq
        %v348 = vshrl.u32 %v347, 7
        %v349 = vsub.s32 1, %v348
        %v350 = vrot.slane %v253, %v349
        %v351 = vmul.f32 %v345, %v350
        %v352 = vadd.f32 %v340, %v351
        %353 = vset.pattern.permute.xlu0 2
        %354 = vperm.xlu0 %353, %v252
        %v355 = vpop.permute.xlu0 %354
        %v357 = vlaneseq
        %v358 = vshrl.u32 %v357, 7
        %v359 = vsub.s32 2, %v358
        %v360 = vrot.slane %v253, %v359
        %v361 = vmul.f32 %v355, %v360
        %v362 = vadd.f32 %v352, %v361
        %363 = vset.pattern.permute.xlu0 3
        %364 = vperm.xlu0 %363, %v252
        %v365 = vpop.permute.xlu0 %364
        %v367 = vlaneseq
        %v368 = vshrl.u32 %v367, 7
        %v369 = vsub.s32 3, %v368
        %v370 = vrot.slane %v253, %v369
        %v371 = vmul.f32 %v365, %v370
        %v372 = vadd.f32 %v362, %v371
        %v373 = vld [vmem:[%s4] sm:$0x1]
        %v375 = vlaneseq
        %v376 = vshrl.u32 %v375, 7
        %v377 = vsub.s32 0, %v376
        %v378 = vrot.slane %v373, %v377
        %v380 = vadd.f32 %v372, %v378
        %381 = vst [vmem:[%s243] sm:$0xff] %v380
        %s382 = sand.u32 %s143, 1
        %s383 = scalar_lea.sflag [#allocation4], %s382
        %s384 = sand.u32 %s143, 1
        %s385 = smul.addr %s384, 8
        %s386 = scalar_lea.vmem [#allocation5], %s385
        // Predicated region
        $region45: #{tpu_custom_call.1} parent=39 // pred_check
          %p387 = pneg %p153
        $region46: #{tpu_custom_call.1} parent=39 // pred_check_branch
          %389 = sbr.rel (%p387) target = $region48
        $region47: #{tpu_custom_call.1} parent=39 // pred_region
          %s391 = ssub.s32 128, 128
          %392 = vsyncadd %s383, %s391
          %s393 = smul.addr %s20, 128
          %s394 = scalar_lea.hbm %s5, %s393
          %s396 = sshll.u32 %s386, 4
          %s397 = int_to_ptr.vmem [resolvable:$true] %s396
          %399 = dma.vmem_to_hbm [thread:$0]  %s397, 128, %s394, %s383
        $region48: #{tpu_custom_call.1} parent=39 // pred_fallthru
          _
      $region40: #{tpu_custom_call.1} parent=5 // pred_fallthru
        _
      %p400 = scmp.le.s32.totalorder 2, %s15
      // Predicated region
      $region49: #{tpu_custom_call.1} parent=5 // pred_check
        %p401 = pneg %p400
      $region50: #{tpu_custom_call.1} parent=5 // pred_check_branch
        %403 = sbr.rel (%p401) target = $region52
      $region51: #{tpu_custom_call.1} parent=5 // pred_region
        %s404 = ssub.s32 %s15, 2
        // Predicated region
        $region53: #{tpu_custom_call.1} parent=51 // pred_check
          %p405 = pneg %p159
        $region54: #{tpu_custom_call.1} parent=51 // pred_check_branch
          %407 = sbr.rel (%p405) target = $region56
        $region55: #{tpu_custom_call.1} parent=51 // pred_region
          %s408 = sand.u32 %s144, 1
          %s409 = scalar_lea.sflag [#allocation4], %s408
          %s410 = sand.u32 %s144, 1
          %s411 = smul.addr %s410, 8
          %s412 = scalar_lea.vmem [#allocation5], %s411
          %413 = dma.done %s409, 128
        $region56: #{tpu_custom_call.1} parent=51 // pred_fallthru
          _
      $region52: #{tpu_custom_call.1} parent=5 // pred_fallthru
        _
    $region6: #{tpu_custom_call.1} parent=1 // loop_footer
      %s19 = sadd.s32 1, %s15
    $region7: #{tpu_custom_call.1} parent=1 // loop_footer_branch
      %14 = sbr.rel target = $region3
    $region8: #{tpu_custom_call.1} parent=1 // loop_exit
      _
    %414 = vsyncpa [#allocation3], 1
    %s415 = scalar_lea.sflag [#allocation3], 1
    %416 = vsyncpa %s415, 1
    %417 = vsyncpa [#allocation4], 1
    %s418 = scalar_lea.sflag [#allocation4], 1
    %419 = vsyncpa %s418, 1

</llo_original>
